<compile_context>
chip_gen: v7x
topology: tpu7x:2x2x1
jax: 0.10.0
libtpu: 0.0.40
codegen_flags: <defaults>
</compile_context>

<pallas_src>
import functools

import jax
import jax.numpy as jnp
from jax import lax
from jax.experimental import pallas as pl
from jax.experimental.pallas import tpu as pltpu


def policy_net_kernel(x_ref, w1_ref, b1_ref, w2t_ref, b2_ref, out_ref, *,
                      steps, batch):
    # x_ref:   (batch*steps, dim_obs) bf16, batch-major rows (row = b*steps + s)
    # w1_ref:  (dim_obs, Hp) bf16      b1_ref: (1, Hp) f32
    # w2t_ref: (dim_action, Hp) bf16   b2_ref: (1, dim_action) f32
    # out_ref: (batch*steps, dim_action) f32
    x = x_ref[...]

    # fc1 + relu: ONE matmul over all steps*batch rows (bf16 MXU, f32 accumulate).
    h = jnp.dot(x, w1_ref[...], preferred_element_type=jnp.float32) + b1_ref[...]
    h = jnp.maximum(h, 0.0)

    # out layer: contract the 256-wide, lane-dense hidden axis of both operands.
    logits = lax.dot_general(
        h.astype(jnp.bfloat16), w2t_ref[...],
        dimension_numbers=(((1,), (1,)), ((), ())),
        preferred_element_type=jnp.float32,
    ) + b2_ref[...]

    # Per-step softmax over the batch axis == F.softmax(..., dim=0) applied to
    # each step's (batch, dim_action) logits.  Rows are batch-major, so batch b
    # occupies the contiguous row block [b*steps, (b+1)*steps).
    blocks = [logits[b * steps:(b + 1) * steps, :] for b in range(batch)]
    m = blocks[0]
    for blk in blocks[1:]:
        m = jnp.maximum(m, blk)
    exps = [jnp.exp(blk - m) for blk in blocks]
    denom = exps[0]
    for e in exps[1:]:
        denom = denom + e
    inv = 1.0 / denom          # exact divide: probabilities sum to 1 per step/column
    for b in range(batch):
        out_ref[b * steps:(b + 1) * steps, :] = exps[b] * inv


def policy_net_forward_steps(xs, w1p, b1p, w2tp, b2):
    """xs: (S, B, dim_obs) f32 -> (S, B, dim_action) f32 probabilities.

    One grid-less pallas_call over the whole batch of S policy steps; weights
    live in VMEM for the entire call.  Per step, softmax is over dim 0 of that
    step's (B, dim_action) logits, matching PolicyNet.forward step-by-step.
    """
    S, B, dim_obs = xs.shape
    dim_action, Hp = w2tp.shape
    N = S * B

    # Batch-major 2D layout (row = b*S + s); layout plumbing stays in the wrapper.
    x2 = jnp.transpose(xs, (1, 0, 2)).reshape(N, dim_obs).astype(jnp.bfloat16)

    cost = pl.CostEstimate(
        flops=2 * N * Hp * (dim_obs + dim_action),
        transcendentals=N * dim_action,
        bytes_accessed=int(N * dim_obs * 2 + w1p.size * 2 + b1p.size * 4
                           + w2tp.size * 2 + b2.size * 4 + N * dim_action * 4),
    )

    out2 = pl.pallas_call(
        functools.partial(policy_net_kernel, steps=S, batch=B),
        out_shape=jax.ShapeDtypeStruct((N, dim_action), jnp.float32),
        # Whole arrays resident in VMEM (total footprint << 1 MiB on all gens).
        in_specs=[pl.BlockSpec(memory_space=pltpu.MemorySpace.VMEM)] * 5,
        out_specs=pl.BlockSpec(memory_space=pltpu.MemorySpace.VMEM),
        cost_estimate=cost,
    )(x2, w1p, b1p, w2tp, b2)

    return jnp.transpose(out2.reshape(B, S, dim_action), (1, 0, 2))


def policy_net_forward(x, w1p, b1p, w2tp, b2):
    """Single PolicyNet.forward call: x (B, dim_obs) -> (B, dim_action)."""
    return policy_net_forward_steps(x[None], w1p, b1p, w2tp, b2)[0]


def init_params(key, dim_obs, dim_action, hidden_dim=200):
    """Deterministic init mimicking nn.Linear's U(-1/sqrt(fan_in), 1/sqrt(fan_in))."""
    k1, k2, k3, k4 = jax.random.split(key, 4)
    lim1 = 1.0 / jnp.sqrt(jnp.float32(dim_obs))
    lim2 = 1.0 / jnp.sqrt(jnp.float32(hidden_dim))
    w1 = jax.random.uniform(k1, (dim_obs, hidden_dim), jnp.float32, -lim1, lim1)
    b1 = jax.random.uniform(k2, (1, hidden_dim), jnp.float32, -lim1, lim1)
    w2 = jax.random.uniform(k3, (hidden_dim, dim_action), jnp.float32, -lim2, lim2)
    b2 = jax.random.uniform(k4, (1, dim_action), jnp.float32, -lim2, lim2)
    return w1, b1, w2, b2


def prepare_params(w1, b1, w2, b2, padded_hidden=256):
    """One-time layout prep for the kernel:
      * zero-pad hidden 200 -> 256 (exact: relu(0)=0 and padded w2 rows are 0)
      * transpose w2 to (dim_action, hidden) so its VMEM tile is lane-dense
      * cast weight matrices to bf16 (MXU-native), keep biases f32
    """
    _, H = w1.shape
    pad = padded_hidden - H
    w1p = jnp.pad(w1, ((0, 0), (0, pad))).astype(jnp.bfloat16)
    b1p = jnp.pad(b1, ((0, 0), (0, pad)))
    w2tp = jnp.pad(w2.T, ((0, 0), (0, pad))).astype(jnp.bfloat16)
    return w1p, b1p, w2tp, b2


if __name__ == "__main__":
    key = jax.random.PRNGKey(0)
    kx, kp = jax.random.split(key)

    S = 8            # policy steps batched into one pallas_call
    B = 2            # batch per step (softmax over this axis, dim=0)
    dim_obs = 16     # dim_obs_space
    dim_action = 4   # dim_action_space
    hidden_dim = 200

    xs = jax.random.normal(kx, (S, B, dim_obs), jnp.float32)
    w1, b1, w2, b2 = init_params(kp, dim_obs, dim_action, hidden_dim)
    w1p, b1p, w2tp, b2p = prepare_params(w1, b1, w2, b2)

    out = policy_net_forward_steps(xs, w1p, b1p, w2tp, b2p)
    out = jax.block_until_ready(out)
    assert out.shape == (S, B, dim_action)

    # Reference 1: same bf16/padded math in plain JAX (tight check of the kernel).
    x2 = jnp.transpose(xs, (1, 0, 2)).reshape(S * B, dim_obs).astype(jnp.bfloat16)
    h = jnp.dot(x2, w1p, preferred_element_type=jnp.float32) + b1p
    h = jnp.maximum(h, 0.0)
    logits = lax.dot_general(
        h.astype(jnp.bfloat16), w2tp,
        dimension_numbers=(((1,), (1,)), ((), ())),
        preferred_element_type=jnp.float32,
    ) + b2p
    logits = jnp.transpose(logits.reshape(B, S, dim_action), (1, 0, 2))
    probs_bf16 = jax.nn.softmax(logits, axis=1)
    assert jnp.allclose(out, probs_bf16, atol=2e-3, rtol=1e-3)

    # Reference 2: original f32 / hidden=200 semantics of the PyTorch module.
    xf = xs.reshape(S * B, dim_obs)
    h32 = jnp.maximum(xf @ w1 + b1, 0.0)
    logits32 = (h32 @ w2 + b2).reshape(S, B, dim_action)
    probs_f32 = jax.nn.softmax(logits32, axis=1)
    assert jnp.allclose(out, probs_f32, atol=2e-2)

    # Exact normalization: per-step probabilities sum to 1 over the batch axis.
    assert jnp.allclose(jnp.sum(out, axis=1), 1.0, atol=1e-4)

    # Single-call wrapper matches step 0 of the batched call.
    single = jax.block_until_ready(policy_net_forward(xs[0], w1p, b1p, w2tp, b2p))
    assert jnp.allclose(single, out[0], atol=2e-3)

    print("KERNEL_OK")
</pallas_src>

<mosaic_0001>
module attributes {stable_mosaic.version = 11 : i64} {
  func.func @policy_net_kernel(%arg0: memref<16x16xbf16, #tpu.memory_space<vmem>>, %arg1: memref<16x256xbf16, #tpu.memory_space<vmem>>, %arg2: memref<1x256xf32, #tpu.memory_space<vmem>>, %arg3: memref<4x256xbf16, #tpu.memory_space<vmem>>, %arg4: memref<1x4xf32, #tpu.memory_space<vmem>>, %arg5: memref<16x4xf32, #tpu.memory_space<vmem>>) attributes {dimension_semantics = [], scalar_prefetch = 0 : i64, scratch_operands = 0 : i64, tpu.core_type = #tpu.core_type<tc>} {
    %c0 = arith.constant 0 : index
    %c0_0 = arith.constant 0 : index
    %0 = vector.load %arg0[%c0, %c0_0] : memref<16x16xbf16, #tpu.memory_space<vmem>>, vector<16x16xbf16>
    %c0_1 = arith.constant 0 : index
    %c0_2 = arith.constant 0 : index
    %1 = vector.load %arg1[%c0_1, %c0_2] : memref<16x256xbf16, #tpu.memory_space<vmem>>, vector<16x256xbf16>
    %cst = arith.constant dense<0.000000e+00> : vector<16x256xf32>
    %2 = tpu.matmul %0, %1, %cst {dimension_numbers = #tpu.dot_dimension_numbers<[1], [0], [0], [1], [0, 0, 1, 1], [], []>} : vector<16x16xbf16>, vector<16x256xbf16>, vector<16x256xf32> -> vector<16x256xf32>
    %c0_3 = arith.constant 0 : index
    %c0_4 = arith.constant 0 : index
    %3 = vector.load %arg2[%c0_3, %c0_4] : memref<1x256xf32, #tpu.memory_space<vmem>>, vector<1x256xf32>
    %4 = vector.broadcast %3 : vector<1x256xf32> to vector<16x256xf32>
    %5 = arith.addf %2, %4 : vector<16x256xf32>
    %cst_5 = arith.constant 0.000000e+00 : f32
    %6 = vector.broadcast %cst_5 : f32 to vector<16x256xf32>
    %7 = arith.maximumf %5, %6 : vector<16x256xf32>
    %8 = arith.truncf %7 : vector<16x256xf32> to vector<16x256xbf16>
    %c0_6 = arith.constant 0 : index
    %c0_7 = arith.constant 0 : index
    %9 = vector.load %arg3[%c0_6, %c0_7] : memref<4x256xbf16, #tpu.memory_space<vmem>>, vector<4x256xbf16>
    %cst_8 = arith.constant dense<0.000000e+00> : vector<16x4xf32>
    %10 = tpu.matmul %8, %9, %cst_8 {dimension_numbers = #tpu.dot_dimension_numbers<[1], [1], [0], [0], [0, 0, 1, 0], [], []>} : vector<16x256xbf16>, vector<4x256xbf16>, vector<16x4xf32> -> vector<16x4xf32>
    %c0_9 = arith.constant 0 : index
    %c0_10 = arith.constant 0 : index
    %11 = vector.load %arg4[%c0_9, %c0_10] : memref<1x4xf32, #tpu.memory_space<vmem>>, vector<1x4xf32>
    %12 = vector.broadcast %11 : vector<1x4xf32> to vector<16x4xf32>
    %13 = arith.addf %10, %12 : vector<16x4xf32>
    %14 = vector.extract_strided_slice %13 {offsets = [0, 0], sizes = [8, 4], strides = [1, 1]} : vector<16x4xf32> to vector<8x4xf32>
    %15 = vector.extract_strided_slice %13 {offsets = [8, 0], sizes = [8, 4], strides = [1, 1]} : vector<16x4xf32> to vector<8x4xf32>
    %16 = arith.maximumf %14, %15 : vector<8x4xf32>
    %17 = arith.subf %14, %16 : vector<8x4xf32>
    %18 = math.exp %17 : vector<8x4xf32>
    %19 = arith.subf %15, %16 : vector<8x4xf32>
    %20 = math.exp %19 : vector<8x4xf32>
    %21 = arith.addf %18, %20 : vector<8x4xf32>
    %cst_11 = arith.constant 1.000000e+00 : f32
    %22 = vector.broadcast %cst_11 : f32 to vector<8x4xf32>
    %23 = arith.divf %22, %21 : vector<8x4xf32>
    %24 = arith.mulf %18, %23 : vector<8x4xf32>
    %c0_12 = arith.constant 0 : index
    %c0_13 = arith.constant 0 : index
    %25 = vector.load %arg5[%c0_12, %c0_13] : memref<16x4xf32, #tpu.memory_space<vmem>>, vector<8x4xf32>
    tpu.vector_store %arg5[%c0_12, %c0_13], %24 {strides = array<i32>} : memref<16x4xf32, #tpu.memory_space<vmem>>, vector<8x4xf32>,
    %26 = arith.mulf %20, %23 : vector<8x4xf32>
    %c8 = arith.constant 8 : index
    %c0_14 = arith.constant 0 : index
    %27 = vector.load %arg5[%c8, %c0_14] : memref<16x4xf32, #tpu.memory_space<vmem>>, vector<8x4xf32>
    tpu.vector_store %arg5[%c8, %c0_14], %26 {strides = array<i32>} : memref<16x4xf32, #tpu.memory_space<vmem>>, vector<8x4xf32>,
    return
  }
}

</mosaic_0001>

<llo_original>
// kernel: tpu_custom_call.1
$region0: #{tpu_custom_call.1}
  #allocation0 [shape = 'u32[]', space=smem, size = 0x4, offset = 0x4, fixed_abs, tag = 'smem constant byte address 0x4 - core index']
  #allocation1 [shape = 'u32[144,128]{1,0:T(1,128)}', space=vmem, size = 0x12000, scoped, tag = 'internal scratch']
  %s0 = inlined_call_operand.hbm [shape: bf16[16,16], index: 0, kind: input, shape index: {}]
  %s1 = inlined_call_operand.hbm [shape: bf16[16,256], index: 1, kind: input, shape index: {}]
  %s2 = inlined_call_operand.vmem [shape: f32[1,256], index: 2, kind: input, shape index: {}]
  %s3 = inlined_call_operand.vmem [shape: bf16[4,256], index: 3, kind: input, shape index: {}]
  %s4 = inlined_call_operand.vmem [shape: f32[1,4], index: 4, kind: input, shape index: {}]
  %s5 = inlined_call_operand.vmem [shape: f32[16,4], index: 5, kind: output, shape index: {}]
  %s6 = sld [smem:[#allocation0]]
  $region38: #{tpu_custom_call.1} parent=0
    _
  %s8 = ssub.s32 1, %s6
  %s9 = scalar_select 0, %s8, %s6
  $region1: #{tpu_custom_call.1} parent=0
    #allocation2 [shape = 'u8[4096]{0}', space=vmem, size = 0x1000, scoped, tag = 'input window, operand 0, single buffered']
    #allocation3 [shape = 's32[1]{0}', space=sflag, size = 0x4, scoped, tag = 'scoped memory for tpu_custom_call.1']
    #allocation4 [shape = 'u8[8192]{0}', space=vmem, size = 0x2000, scoped, tag = 'input window, operand 1, single buffered']
    #allocation5 [shape = 's32[1]{0}', space=sflag, size = 0x4, scoped, tag = 'scoped memory for tpu_custom_call.1']
    %10 = vsyncpa [#allocation3], 0
    %11 = vsyncpa [#allocation5], 0
    // Predicated region
    $region2: #{tpu_custom_call.1} parent=1 // pred_check
      _
    $region3: #{tpu_custom_call.1} parent=1 // pred_check_branch
      %13 = sbr.rel (0) target = $region5
    $region4: #{tpu_custom_call.1} parent=1 // pred_region
      %s15 = ssub.s32 128, 128
      %16 = vsyncadd [#allocation3], %s15
      %s17 = sshll.u32 [#allocation2], 4
      %s18 = int_to_ptr.vmem [resolvable:$true] %s17
      %23 = dma.hbm_to_vmem [thread:$0]  %s0, 128, %s18, [#allocation3], 64, 64, 4
    $region5: #{tpu_custom_call.1} parent=1 // pred_fallthru
      _
    // Predicated region
    $region6: #{tpu_custom_call.1} parent=1 // pred_check
      _
    $region7: #{tpu_custom_call.1} parent=1 // pred_check_branch
      %25 = sbr.rel (0) target = $region9
    $region8: #{tpu_custom_call.1} parent=1 // pred_region
      %s27 = ssub.s32 256, 256
      %28 = vsyncadd [#allocation5], %s27
      %s29 = sshll.u32 [#allocation4], 4
      %s30 = int_to_ptr.vmem [resolvable:$true] %s29
      %35 = dma.hbm_to_vmem [thread:$0]  %s1, 256, %s30, [#allocation5], 128, 128, 8
    $region9: #{tpu_custom_call.1} parent=1 // pred_fallthru
      _
    // Predicated region
    $region10: #{tpu_custom_call.1} parent=1 // pred_check
      _
    $region11: #{tpu_custom_call.1} parent=1 // pred_check_branch
      %37 = sbr.rel (0) target = $region13
    $region12: #{tpu_custom_call.1} parent=1 // pred_region
      _
    $region13: #{tpu_custom_call.1} parent=1 // pred_fallthru
      _
    // Predicated region
    $region14: #{tpu_custom_call.1} parent=1 // pred_check
      _
    $region15: #{tpu_custom_call.1} parent=1 // pred_check_branch
      %39 = sbr.rel (0) target = $region17
    $region16: #{tpu_custom_call.1} parent=1 // pred_region
      _
    $region17: #{tpu_custom_call.1} parent=1 // pred_fallthru
      _
    // Predicated region
    $region18: #{tpu_custom_call.1} parent=1 // pred_check
      _
    $region19: #{tpu_custom_call.1} parent=1 // pred_check_branch
      %41 = sbr.rel (0) target = $region21
    $region20: #{tpu_custom_call.1} parent=1 // pred_region
      _
    $region21: #{tpu_custom_call.1} parent=1 // pred_fallthru
      _
    // Predicated region
    $region22: #{tpu_custom_call.1} parent=1 // pred_check
      _
    $region23: #{tpu_custom_call.1} parent=1 // pred_check_branch
      %43 = sbr.rel (0) target = $region25
    $region24: #{tpu_custom_call.1} parent=1 // pred_region
      %44 = dma.done [#allocation3], 128
    $region25: #{tpu_custom_call.1} parent=1 // pred_fallthru
      _
    // Predicated region
    $region26: #{tpu_custom_call.1} parent=1 // pred_check
      _
    $region27: #{tpu_custom_call.1} parent=1 // pred_check_branch
      %46 = sbr.rel (0) target = $region29
    $region28: #{tpu_custom_call.1} parent=1 // pred_region
      %47 = dma.done [#allocation5], 256
    $region29: #{tpu_custom_call.1} parent=1 // pred_fallthru
      _
    %v49 = vld [vmem:[#allocation2] sm:$0xf]
    %v50 = vld [vmem:[#allocation2 + $0x4] sm:$0xf]
    %v51 = vld [vmem:[#allocation4] sm:$0xff]
    %v52 = vld [vmem:[#allocation4 + $0x8] sm:$0xff]
    %v53 = vld [vmem:[%s2] sm:$0x3]
    %v55 = vlaneseq
    %v56 = vshrl.u32 %v55, 7
    %v57 = vsub.s32 0, %v56
    %v58 = vrot.slane %v53, %v57
    %v59 = vlaneseq
    %v60 = vshrl.u32 %v59, 7
    %v61 = vsub.s32 1, %v60
    %v62 = vrot.slane %v53, %v61
    %v67 = vunpack.c.l.b16 %v49
    %v68 = vunpack.c.l.b16 %v50
    %v69 = vpack.c.b16 %v68, %v67
    %v72 = vunpack.c.l.b16 %v51
    %v73 = vunpack.c.h.b16 %v51
    %v74 = vunpack.c.l.b16 %v52
    %v75 = vunpack.c.h.b16 %v52
    %v76 = vpack.c.b16 %v74, %v72
    %v77 = vpack.c.b16 %v75, %v73
    %vm80 = vcmask 130048
    %v82 = vsel %vm80, %v69, 0
    %84 = vmatprep.subr.bf16.mxu0 %v77
    %85 = vmatpush1.bf16.msra.mxu0 %v76
    %86 = vmatprep.subr.bf16.mxu0 0
    %87 = vmatpush1.bf16.msra.mxu0 0
    %88 = vmatprep.subr.bf16.mxu0 0
    %89 = vmatpush1.bf16.msra.mxu0 0
    %90 = vmatprep.subr.bf16.mxu0 0
    %91 = vmatpush1.bf16.msra.mxu0 0
    %92 = vmatprep.subr.bf16.mxu0 0
    %93 = vmatpush1.bf16.msra.mxu0 0
    %94 = vmatprep.subr.bf16.mxu0 0
    %95 = vmatpush1.bf16.msra.mxu0 0
    %96 = vmatprep.subr.bf16.mxu0 0
    %97 = vmatpush1.bf16.msra.mxu0 0
    %98 = vmatprep.subr.bf16.mxu0 0
    %99 = vmatpush1.bf16.msra.mxu0 0
    %100 = vmatprep.subr.bf16.mxu0 0
    %101 = vmatpush1.bf16.msra.mxu0 0
    %102 = vmatprep.subr.bf16.mxu0 0
    %103 = vmatpush1.bf16.msra.mxu0 0
    %104 = vmatprep.subr.bf16.mxu0 0
    %105 = vmatpush1.bf16.msra.mxu0 0
    %106 = vmatprep.subr.bf16.mxu0 0
    %107 = vmatpush1.bf16.msra.mxu0 0
    %108 = vmatprep.subr.bf16.mxu0 0
    %109 = vmatpush1.bf16.msra.mxu0 0
    %110 = vmatprep.subr.bf16.mxu0 0
    %111 = vmatpush1.bf16.msra.mxu0 0
    %112 = vmatprep.subr.bf16.mxu0 0
    %113 = vmatpush1.bf16.msra.mxu0 0
    %114 = vmatprep.subr.bf16.mxu0 0
    %115 = vmatpush1.bf16.msra.mxu0 0
    %116 = vmatprep.mubr.bf16.mxu0 0
    %117 = vmatmul.mubr.bf16.gmra.mrb[0].mxu0 %v82
    %v118 = vpop.f32.mrb[0].mxu0
    %v119 = vadd.f32 %v58, %v118
    %v120 = vpop.f32.mrb[0].mxu0
    %v121 = vadd.f32 %v62, %v120
    %v122 = vpop.f32.mrb[0].mxu0
    %v123 = vadd.f32 %v58, %v122
    %v124 = vpop.f32.mrb[0].mxu0
    %v125 = vadd.f32 %v62, %v124
    %126 = vdwg.mxu0
    %v127 = vmax.f32 %v119, 0.0
    %v128 = vmax.f32 %v121, 0.0
    %v129 = vmax.f32 %v123, 0.0
    %v130 = vmax.f32 %v125, 0.0
    %v131 = vpack.c.bf16 %v129, %v127
    %v132 = vpack.c.bf16 %v130, %v128
    %v133 = vld [vmem:[%s3] sm:$0xf]
    %v134 = vld [vmem:[%s4] sm:$0x1]
    %v136 = vlaneseq
    %v137 = vshrl.u32 %v136, 7
    %v138 = vsub.s32 0, %v137
    %v139 = vrot.slane %v134, %v138
    %v143 = vunpack.c.l.s4 1983009808
    %v144 = vunpack.c.0.s8 %v143
    %v145 = vlaneseq
    %v146 = vshrl.u32 %v145, 7
    %v147 = vsub.s32 %v144, %v146
    %v148 = vrot.slane %v133, %v147
    %v149 = vcombine.high %v148, %v148
    %152 = vmatprep.subr.bf16.mxu0 %v149
    %153 = vmatpush1.bf16.xpose.msra.mxu0 %v148
    %154 = vmatprep.subr.bf16.mxu0 0
    %155 = vmatpush1.bf16.xpose.msra.mxu0 0
    %156 = vmatprep.subr.bf16.mxu0 0
    %157 = vmatpush1.bf16.xpose.msra.mxu0 0
    %158 = vmatprep.subr.bf16.mxu0 0
    %159 = vmatpush1.bf16.xpose.msra.mxu0 0
    %160 = vmatprep.subr.bf16.mxu0 0
    %161 = vmatpush1.bf16.xpose.msra.mxu0 0
    %162 = vmatprep.subr.bf16.mxu0 0
    %163 = vmatpush1.bf16.xpose.msra.mxu0 0
    %164 = vmatprep.subr.bf16.mxu0 0
    %165 = vmatpush1.bf16.xpose.msra.mxu0 0
    %166 = vmatprep.subr.bf16.mxu0 0
    %167 = vmatpush1.bf16.xpose.msra.mxu0 0
    %168 = vmatprep.subr.bf16.mxu0 0
    %169 = vmatpush1.bf16.xpose.msra.mxu0 0
    %170 = vmatprep.subr.bf16.mxu0 0
    %171 = vmatpush1.bf16.xpose.msra.mxu0 0
    %172 = vmatprep.subr.bf16.mxu0 0
    %173 = vmatpush1.bf16.xpose.msra.mxu0 0
    %174 = vmatprep.subr.bf16.mxu0 0
    %175 = vmatpush1.bf16.xpose.msra.mxu0 0
    %176 = vmatprep.subr.bf16.mxu0 0
    %177 = vmatpush1.bf16.xpose.msra.mxu0 0
    %178 = vmatprep.subr.bf16.mxu0 0
    %179 = vmatpush1.bf16.xpose.msra.mxu0 0
    %180 = vmatprep.subr.bf16.mxu0 0
    %181 = vmatpush1.bf16.xpose.msra.mxu0 0
    %182 = vmatprep.subr.bf16.mxu0 0
    %183 = vmatpush1.bf16.xpose.msra.mxu0 0
    %184 = vmatprep.mubr.bf16.mxu0 %v132
    %185 = vmatmul.mubr.bf16.gmra.mrb[0].mxu0 %v131
    %v186 = vpop.f32.mrb[0].mxu0
    %v187 = vadd.f32 %v139, %v186
    %v188 = vpop.f32.mrb[0].mxu0
    %v189 = vpop.f32.mrb[0].mxu0
    %v190 = vadd.f32 %v139, %v189
    %v191 = vpop.f32.mrb[0].mxu0
    %192 = vdwg.mxu0
    %v193 = vmax.f32 %v187, %v190
    %v194 = vsub.f32 %v187, %v193
    %v195 = vmul.f32 %v194, 1.442695
    %v196 = vpow.pop %v195
    %v197 = vsub.f32 %v190, %v193
    %v198 = vmul.f32 %v197, 1.442695
    %v199 = vpow.pop %v198
    %v200 = vadd.f32 %v196, %v199
    %v201 = vrcp.pop %v200
    %v202 = vmul.f32 1.0, %v201
    %v203 = vmul.f32 %v196, %v202
    %vm204 = vcmask 31744
    %205 = vst.msk [vmem:[%s5] sm:$0xff] %vm204, %v203
    %v206 = vmul.f32 %v199, %v202
    %207 = vst.msk [vmem:[%s5 + $0x8] sm:$0xff] %vm204, %v206
    // Predicated region
    $region30: #{tpu_custom_call.1} parent=1 // pred_check
      _
    $region31: #{tpu_custom_call.1} parent=1 // pred_check_branch
      %209 = sbr.rel (0) target = $region33
    $region32: #{tpu_custom_call.1} parent=1 // pred_region
      _
    $region33: #{tpu_custom_call.1} parent=1 // pred_fallthru
      _
    // Predicated region
    $region34: #{tpu_custom_call.1} parent=1 // pred_check
      _
    $region35: #{tpu_custom_call.1} parent=1 // pred_check_branch
      %211 = sbr.rel (0) target = $region37
    $region36: #{tpu_custom_call.1} parent=1 // pred_region
      _
    $region37: #{tpu_custom_call.1} parent=1 // pred_fallthru
      _
    %212 = vsyncpa [#allocation3], 1
    %213 = vsyncpa [#allocation5], 1

</llo_original>
